<compile_context>
chip_gen: v7x
topology: tpu7x:2x2x1
jax: 0.10.0
libtpu: 0.0.40
codegen_flags: <defaults>
</compile_context>

<pallas_src>
import functools

import jax
import jax.numpy as jnp
from jax.experimental import pallas as pl
from jax.experimental.pallas import tpu as pltpu


_VMEM_TILE_BUDGET_BYTES = 12 * 1024 * 1024   # 3 inputs x 2 pipeline buffers
_VMEM_LIMIT_BYTES = 32 * 1024 * 1024         # safe on v5e/v6e/v7x
_MAX_TILE_BATCH = 1024
_TARGET_GRID_STEPS = 8


def _round_up(x, m):
    return ((x + m - 1) // m) * m


def _choose_tile_batch(n, k, itemsize):
    """Pick a batch tile: VMEM-bounded, multiple of 8, enough grid steps."""
    # VMEM cap: 3 inputs x 2 pipeline buffers x TB x K x itemsize <= budget.
    tb = _VMEM_TILE_BUDGET_BYTES // (3 * 2 * k * itemsize)
    tb = max(8, (tb // 8) * 8)
    tb = min(tb, _MAX_TILE_BATCH)

    n8 = _round_up(n, 8)
    tb = min(tb, n8)

    # Prefer >= _TARGET_GRID_STEPS steps so the DMA pipeline has work to
    # overlap, but never shrink tiles below ~256 rows (small tiles waste HBM
    # bandwidth: measured ~29% of roofline at 128 rows vs ~85% at 512).
    if n8 // tb < _TARGET_GRID_STEPS:
        tb_for_steps = _round_up(max(256, -(-n8 // _TARGET_GRID_STEPS)), 8)
        tb = min(tb, max(8, tb_for_steps))

    return max(8, min(tb, n8))


def _loss_kernel(o_ref, y_ref, c_ref, partial_ref, *, lambd):
    # Upcast in-vreg; inputs may be bf16 in HBM (halves the bytes read).
    o = o_ref[...].astype(jnp.float32)            # (TB, K)
    y = y_ref[...].astype(jnp.float32)            # (TB, K)
    c = c_ref[...].astype(jnp.float32)            # (TB, K)

    # Numerically-stable log_softmax along the class (lane) axis.
    # NOTE: for vocabulary-scale K (>32k) add a K grid axis with an online
    # logsumexp instead of shrinking the batch tile; K here fits a full row.
    m = jnp.max(o, axis=1, keepdims=True)         # (TB, 1)
    shifted = o - m
    lse = jnp.log(jnp.sum(jnp.exp(shifted), axis=1, keepdims=True))
    lsm = shifted - lse                           # log_softmax(O, dim=1)

    val = y * (jnp.float32(lambd) * c - lsm)      # (TB, K)

    # One f32 partial per grid step, broadcast into an (8,128)-aligned block.
    # Final sum and /N happen once in the wrapper (also improves accuracy vs.
    # serially accumulating into a single scalar).
    partial_ref[...] = jnp.full(partial_ref.shape, jnp.sum(val), jnp.float32)


def loss_pallas(o, y, c, lambd, *, tile_batch=None):
    n, k = o.shape
    assert y.shape == (n, k) and c.shape == (n, k)

    itemsize = max(o.dtype.itemsize, y.dtype.itemsize, c.dtype.itemsize)
    if tile_batch is None:
        tile_batch = _choose_tile_batch(n, k, itemsize)
    else:
        assert tile_batch == n or tile_batch % 8 == 0, (
            "tile_batch must equal N or be a multiple of 8")

    # Zero-pad the batch so it divides evenly into tiles.  Padded rows have
    # Y == 0, so their contribution to the sum is exactly 0; the mean below
    # still divides by the original N.
    n_pad = _round_up(n, tile_batch)
    if n_pad != n:
        pad = ((0, n_pad - n), (0, 0))
        o = jnp.pad(o, pad)
        y = jnp.pad(y, pad)
        c = jnp.pad(c, pad)

    num_tiles = n_pad // tile_batch
    kernel = functools.partial(_loss_kernel, lambd=float(lambd))

    in_spec = pl.BlockSpec((tile_batch, k), lambda i: (i, 0))
    out_spec = pl.BlockSpec((1, 8, 128), lambda i: (i, 0, 0))

    partials = pl.pallas_call(
        kernel,
        out_shape=jax.ShapeDtypeStruct((num_tiles, 8, 128), jnp.float32),
        grid_spec=pltpu.PrefetchScalarGridSpec(
            num_scalar_prefetch=0,
            grid=(num_tiles,),
            in_specs=[in_spec, in_spec, in_spec],
            out_specs=out_spec,
        ),
        compiler_params=pltpu.CompilerParams(
            # Each grid step writes its own output block -> fully parallel
            # (uses both TensorCores on v7x; no effect on v5e/v6e).
            dimension_semantics=("parallel",),
            vmem_limit_bytes=_VMEM_LIMIT_BYTES,
        ),
    )(o, y, c)

    # Tiny final reduction + the mean(dim=0) normalization, done once.
    return jnp.sum(partials[:, 0, 0]) / jnp.float32(n)


def loss_ref(o, y, c, lambd):
    lsm = jax.nn.log_softmax(o.astype(jnp.float32), axis=1)
    return jnp.sum(jnp.mean(y.astype(jnp.float32) *
                            (lambd * c.astype(jnp.float32) - lsm), axis=0))


if __name__ == "__main__":
    key = jax.random.PRNGKey(0)
    k_o, k_y, k_c = jax.random.split(key, 3)

    LAMBD = 0.5

    # Case 1: small shape from the module spec, default tiling.
    N, K = 8, 128
    O = jax.random.normal(k_o, (N, K), dtype=jnp.float32)
    Y = jax.random.uniform(k_y, (N, K), dtype=jnp.float32)
    C = jax.random.normal(k_c, (N, K), dtype=jnp.float32)

    out = jax.block_until_ready(loss_pallas(O, Y, C, LAMBD))
    ref = loss_ref(O, Y, C, LAMBD)
    assert jnp.allclose(out, ref, rtol=1e-5, atol=1e-5), (out, ref)

    # Case 2: ragged batch + explicit small tile -> exercises multi-tile grid,
    # per-step partials, and the zero-padding tail path.
    N2 = 20
    O2 = jax.random.normal(k_o, (N2, K), dtype=jnp.float32)
    Y2 = jax.random.uniform(k_y, (N2, K), dtype=jnp.float32)
    C2 = jax.random.normal(k_c, (N2, K), dtype=jnp.float32)

    out2 = jax.block_until_ready(loss_pallas(O2, Y2, C2, LAMBD, tile_batch=8))
    ref2 = loss_ref(O2, Y2, C2, LAMBD)
    assert jnp.allclose(out2, ref2, rtol=1e-5, atol=1e-5), (out2, ref2)

    print("KERNEL_OK")
</pallas_src>

<mosaic_0001>
module attributes {stable_mosaic.version = 11 : i64} {
  func.func @_loss_kernel(%arg0: i32, %arg1: memref<8x128xf32, #tpu.memory_space<vmem>>, %arg2: memref<8x128xf32, #tpu.memory_space<vmem>>, %arg3: memref<8x128xf32, #tpu.memory_space<vmem>>, %arg4: memref<1x8x128xf32, #tpu.memory_space<vmem>>) attributes {dimension_semantics = [#tpu.dimension_semantics<parallel>], iteration_bounds = array<i64: 1>, scalar_prefetch = 0 : i64, scratch_operands = 0 : i64, tpu.core_type = #tpu.core_type<tc>, window_params = [{transform_indices = @transform_0, window_bounds = array<i64: 8, 128>}, {transform_indices = @transform_1, window_bounds = array<i64: 8, 128>}, {transform_indices = @transform_2, window_bounds = array<i64: 8, 128>}, {transform_indices = @transform_3, window_bounds = array<i64: 1, 8, 128>}]} {
    %c0 = arith.constant 0 : index
    %c0_0 = arith.constant 0 : index
    %0 = vector.load %arg1[%c0, %c0_0] : memref<8x128xf32, #tpu.memory_space<vmem>>, vector<8x128xf32>
    %c0_1 = arith.constant 0 : index
    %c0_2 = arith.constant 0 : index
    %1 = vector.load %arg2[%c0_1, %c0_2] : memref<8x128xf32, #tpu.memory_space<vmem>>, vector<8x128xf32>
    %c0_3 = arith.constant 0 : index
    %c0_4 = arith.constant 0 : index
    %2 = vector.load %arg3[%c0_3, %c0_4] : memref<8x128xf32, #tpu.memory_space<vmem>>, vector<8x128xf32>
    %cst = arith.constant dense<0xFF800000> : vector<8xf32>
    %3 = vector.multi_reduction <maximumf>, %0, %cst [1] : vector<8x128xf32> to vector<8xf32>
    %4 = vector.shape_cast %3 : vector<8xf32> to vector<8x1xf32>
    %5 = vector.broadcast %4 : vector<8x1xf32> to vector<8x128xf32>
    %6 = arith.subf %0, %5 : vector<8x128xf32>
    %7 = math.exp %6 : vector<8x128xf32>
    %cst_5 = arith.constant dense<0.000000e+00> : vector<8xf32>
    %8 = vector.multi_reduction <add>, %7, %cst_5 [1] : vector<8x128xf32> to vector<8xf32>
    %9 = vector.shape_cast %8 : vector<8xf32> to vector<8x1xf32>
    %10 = math.log %9 : vector<8x1xf32>
    %11 = vector.broadcast %10 : vector<8x1xf32> to vector<8x128xf32>
    %12 = arith.subf %6, %11 : vector<8x128xf32>
    %cst_6 = arith.constant 5.000000e-01 : f32
    %13 = vector.broadcast %cst_6 : f32 to vector<8x128xf32>
    %14 = arith.mulf %13, %2 : vector<8x128xf32>
    %15 = arith.subf %14, %12 : vector<8x128xf32>
    %16 = arith.mulf %1, %15 : vector<8x128xf32>
    %17 = vector.shape_cast %16 : vector<8x128xf32> to vector<1x8x128xf32>
    %cst_7 = arith.constant dense<0.000000e+00> : vector<1xf32>
    %18 = vector.multi_reduction <add>, %17, %cst_7 [1, 2] : vector<1x8x128xf32> to vector<1xf32>
    %19 = vector.shape_cast %18 : vector<1xf32> to vector<1x1x1xf32>
    %20 = vector.extract %19[0, 0, 0] : f32 from vector<1x1x1xf32>
    %21 = vector.broadcast %20 : f32 to vector<1x8x128xf32>
    %c0_8 = arith.constant 0 : index
    %c0_9 = arith.constant 0 : index
    %c0_10 = arith.constant 0 : index
    %22 = vector.load %arg4[%c0_8, %c0_9, %c0_10] : memref<1x8x128xf32, #tpu.memory_space<vmem>>, vector<1x8x128xf32>
    tpu.vector_store %arg4[%c0_8, %c0_9, %c0_10], %21 {strides = array<i32>} : memref<1x8x128xf32, #tpu.memory_space<vmem>>, vector<1x8x128xf32>,
    return
  }
  func.func @transform_0(%arg0: i32) -> (i32, i32) {
    %c0_i32 = arith.constant 0 : i32
    %c0_i32_0 = arith.constant 0 : i32
    return %arg0, %c0_i32 : i32, i32
  }
  func.func @transform_1(%arg0: i32) -> (i32, i32) {
    %c0_i32 = arith.constant 0 : i32
    %c0_i32_0 = arith.constant 0 : i32
    return %arg0, %c0_i32 : i32, i32
  }
  func.func @transform_2(%arg0: i32) -> (i32, i32) {
    %c0_i32 = arith.constant 0 : i32
    %c0_i32_0 = arith.constant 0 : i32
    return %arg0, %c0_i32 : i32, i32
  }
  func.func @transform_3(%arg0: i32) -> (i32, i32, i32) {
    %c0_i32 = arith.constant 0 : i32
    %c0_i32_0 = arith.constant 0 : i32
    %c0_i32_1 = arith.constant 0 : i32
    return %arg0, %c0_i32, %c0_i32_0 : i32, i32, i32
  }
}

</mosaic_0001>

<llo_original>
// kernel: tpu_custom_call.1
$region0: #{tpu_custom_call.1}
  #allocation0 [shape = 'u32[]', space=smem, size = 0x4, offset = 0x4, fixed_abs, tag = 'smem constant byte address 0x4 - core index']
  #allocation1 [shape = 'u32[144,128]{1,0:T(1,128)}', space=vmem, size = 0x12000, scoped, tag = 'internal scratch']
  %s0 = inlined_call_operand.hbm [shape: f32[8,128], index: 0, kind: input, shape index: {}]
  %s1 = inlined_call_operand.hbm [shape: f32[8,128], index: 1, kind: input, shape index: {}]
  %s2 = inlined_call_operand.hbm [shape: f32[8,128], index: 2, kind: input, shape index: {}]
  %s3 = inlined_call_operand.hbm [shape: f32[1,8,128], index: 3, kind: output, shape index: {}]
  %s4 = sld [smem:[#allocation0]]
  $region34: #{tpu_custom_call.1} parent=0
    _
  %s6 = ssub.s32 1, %s4
  %s7 = scalar_select 0, %s6, %s4
  $region1: #{tpu_custom_call.1} parent=0
    #allocation2 [shape = 'u8[4096]{0}', space=vmem, size = 0x1000, scoped, tag = 'input window, operand 0, single buffered']
    #allocation3 [shape = 's32[1]{0}', space=sflag, size = 0x4, scoped, tag = 'scoped memory for tpu_custom_call.1']
    #allocation4 [shape = 's32[1]{0}', space=sflag, size = 0x4, scoped, tag = 'scoped memory for tpu_custom_call.1']
    #allocation5 [shape = 'u8[4096]{0}', space=vmem, size = 0x1000, scoped, tag = 'input window, operand 1, single buffered']
    #allocation6 [shape = 's32[1]{0}', space=sflag, size = 0x4, scoped, tag = 'scoped memory for tpu_custom_call.1']
    #allocation7 [shape = 'u8[4096]{0}', space=vmem, size = 0x1000, scoped, tag = 'input window, operand 2, single buffered']
    #allocation8 [shape = 'u8[4096]{0}', space=vmem, size = 0x1000, scoped, tag = 'output window, operand 0, single buffered']
    %8 = vsyncpa [#allocation3], 0
    %9 = vsyncpa [#allocation6], 0
    %10 = vsyncpa [#allocation4], 0
    // Predicated region
    $region2: #{tpu_custom_call.1} parent=1 // pred_check
      _
    $region3: #{tpu_custom_call.1} parent=1 // pred_check_branch
      %12 = sbr.rel (0) target = $region5
    $region4: #{tpu_custom_call.1} parent=1 // pred_region
      %s14 = ssub.s32 128, 128
      %15 = vsyncadd [#allocation3], %s14
      %s17 = sshll.u32 [#allocation2], 4
      %s18 = int_to_ptr.vmem [resolvable:$true] %s17
      %20 = dma.hbm_to_vmem [thread:$0]  %s0, 128, %s18, [#allocation3]
    $region5: #{tpu_custom_call.1} parent=1 // pred_fallthru
      _
    // Predicated region
    $region6: #{tpu_custom_call.1} parent=1 // pred_check
      _
    $region7: #{tpu_custom_call.1} parent=1 // pred_check_branch
      %22 = sbr.rel (0) target = $region9
    $region8: #{tpu_custom_call.1} parent=1 // pred_region
      %s24 = ssub.s32 128, 128
      %25 = vsyncadd [#allocation6], %s24
      %s27 = sshll.u32 [#allocation5], 4
      %s28 = int_to_ptr.vmem [resolvable:$true] %s27
      %30 = dma.hbm_to_vmem [thread:$0]  %s1, 128, %s28, [#allocation6]
    $region9: #{tpu_custom_call.1} parent=1 // pred_fallthru
      _
    // Predicated region
    $region10: #{tpu_custom_call.1} parent=1 // pred_check
      _
    $region11: #{tpu_custom_call.1} parent=1 // pred_check_branch
      %32 = sbr.rel (0) target = $region13
    $region12: #{tpu_custom_call.1} parent=1 // pred_region
      %s34 = ssub.s32 128, 128
      %35 = vsyncadd [#allocation6], %s34
      %s37 = sshll.u32 [#allocation7], 4
      %s38 = int_to_ptr.vmem [resolvable:$true] %s37
      %40 = dma.hbm_to_vmem [thread:$0]  %s2, 128, %s38, [#allocation6]
    $region13: #{tpu_custom_call.1} parent=1 // pred_fallthru
      _
    // Predicated region
    $region14: #{tpu_custom_call.1} parent=1 // pred_check
      _
    $region15: #{tpu_custom_call.1} parent=1 // pred_check_branch
      %42 = sbr.rel (0) target = $region17
    $region16: #{tpu_custom_call.1} parent=1 // pred_region
      %43 = dma.done [#allocation3], 128
    $region17: #{tpu_custom_call.1} parent=1 // pred_fallthru
      _
    // Predicated region
    $region18: #{tpu_custom_call.1} parent=1 // pred_check
      _
    $region19: #{tpu_custom_call.1} parent=1 // pred_check_branch
      %45 = sbr.rel (0) target = $region21
    $region20: #{tpu_custom_call.1} parent=1 // pred_region
      %46 = dma.done [#allocation6], 128
    $region21: #{tpu_custom_call.1} parent=1 // pred_fallthru
      _
    // Predicated region
    $region22: #{tpu_custom_call.1} parent=1 // pred_check
      _
    $region23: #{tpu_custom_call.1} parent=1 // pred_check_branch
      %48 = sbr.rel (0) target = $region25
    $region24: #{tpu_custom_call.1} parent=1 // pred_region
      %49 = dma.done [#allocation6], 128
    $region25: #{tpu_custom_call.1} parent=1 // pred_fallthru
      _
    %v50 = vld [vmem:[#allocation2] sm:$0xff]
    %v51 = vld [vmem:[#allocation5] sm:$0xff]
    %v52 = vld [vmem:[#allocation7] sm:$0xff]
    %53 = vmax.xlane.f32.xlu0 %v50
    %v54 = vpop.xlane.xlu0 %53
    %v55 = vsub.f32 %v50, %v54
    %v56 = vmul.f32 %v55, 1.442695
    %v57 = vpow.pop %v56
    %58 = vadd.xlane.f32.xlu0 %v57
    %v59 = vpop.xlane.xlu0 %58
    %v60 = vlog2.pop %v59
    %v61 = vmul.f32 %v60, 0.6931472
    %v62 = vsub.f32 %v55, %v61
    %v63 = vmul.f32 %v52, 0.5
    %v64 = vsub.f32 %v63, %v62
    %v65 = vmul.f32 %v51, %v64
    %66 = vadd.xlane.f32.xlu0 %v65
    %v67 = vpop.xlane.xlu0 %66
    %v68 = vrot.slane %v67, 4
    %v69 = vadd.f32 %v67, %v68
    %v70 = vrot.slane %v69, 2
    %v71 = vadd.f32 %v69, %v70
    %v72 = vrot.slane %v71, 1
    %v73 = vadd.f32 %v71, %v72
    %s74 = vtos %v73
    %v75 = vstv %s74
    %76 = vst [vmem:[#allocation8] sm:$0xff] %v75
    // Predicated region
    $region26: #{tpu_custom_call.1} parent=1 // pred_check
      _
    $region27: #{tpu_custom_call.1} parent=1 // pred_check_branch
      %78 = sbr.rel (0) target = $region29
    $region28: #{tpu_custom_call.1} parent=1 // pred_region
      %s80 = ssub.s32 128, 128
      %81 = vsyncadd [#allocation4], %s80
      %s83 = sshll.u32 [#allocation8], 4
      %s84 = int_to_ptr.vmem [resolvable:$true] %s83
      %86 = dma.vmem_to_hbm [thread:$0]  %s84, 128, %s3, [#allocation4]
    $region29: #{tpu_custom_call.1} parent=1 // pred_fallthru
      _
    // Predicated region
    $region30: #{tpu_custom_call.1} parent=1 // pred_check
      _
    $region31: #{tpu_custom_call.1} parent=1 // pred_check_branch
      %88 = sbr.rel (0) target = $region33
    $region32: #{tpu_custom_call.1} parent=1 // pred_region
      %89 = dma.done [#allocation4], 128
    $region33: #{tpu_custom_call.1} parent=1 // pred_fallthru
      _
    %90 = vsyncpa [#allocation3], 1
    %91 = vsyncpa [#allocation6], 1
    %92 = vsyncpa [#allocation4], 1

</llo_original>
